<compile_context>
chip_gen: v7x
topology: tpu7x:2x2x1
jax: 0.10.0
libtpu: 0.0.40
codegen_flags: <defaults>
</compile_context>

<pallas_src>
import functools

import jax
import jax.numpy as jnp
import numpy as np
from jax import lax
from jax.experimental import pallas as pl
from jax.experimental.pallas import tpu as pltpu


def _round_up(x, m):
    return (x + m - 1) // m * m


def _center_intersection_kernel(emb_ref, w1_ref, b1_ref, w2_ref, b2_ref, out_ref,
                                *, mxu_dtype, approx_recip):
    # emb_ref: (N, TB, Dp) in the embeddings' native dtype
    # w1_ref/w2_ref: (Dp, Dp) in PyTorch (out, in) layout, mxu_dtype — contracted on axis 1
    # b1_ref/b2_ref: (1, Dp) f32
    emb = emb_ref[...]
    n, tb, d = emb.shape

    # Layout-preserving fold (TB % sublane == 0, Dp % 128 == 0).
    x2d = emb.reshape(n * tb, d).astype(mxu_dtype)

    # layer1 = relu(x @ W1.T + b1); bf16 (or f32) MXU inputs, f32 accumulation.
    h = lax.dot_general(
        x2d, w1_ref[...],
        dimension_numbers=(((1,), (1,)), ((), ())),
        preferred_element_type=jnp.float32)
    h = jnp.maximum(h + b1_ref[...], 0.0)

    # layer2 logits = layer1_act @ W2.T + b2.
    logits = lax.dot_general(
        h.astype(mxu_dtype), w2_ref[...],
        dimension_numbers=(((1,), (1,)), ((), ())),
        preferred_element_type=jnp.float32)
    logits = (logits + b2_ref[...]).reshape(n, tb, d)

    # Softmax over the intersection axis N and attention-weighted sum of the
    # embeddings. N is small & static, so a per-set loop keeps the live f32
    # temporaries at O(TB*Dp) instead of O(N*TB*Dp).
    m = jnp.max(logits, axis=0)                       # (TB, Dp)
    denom = jnp.zeros((tb, d), jnp.float32)
    weighted = jnp.zeros((tb, d), jnp.float32)
    for i in range(n):
        e_i = jnp.exp(logits[i] - m)                  # (TB, Dp), EUP
        denom = denom + e_i
        weighted = weighted + e_i * emb[i].astype(jnp.float32)

    if approx_recip:
        out = weighted * pl.reciprocal(denom, approx=True)   # EUP slot, ~free
    else:
        out = weighted / denom
    out_ref[...] = out.astype(out_ref.dtype)


def center_intersection(embeddings, w1, b1, w2, b2, *,
                        use_bf16_mxu=True, approx_recip=None):
    """embeddings: (N, B, D); w1, w2: (D, D) PyTorch (out, in) layout; b1, b2: (D,)."""
    n, b, d = embeddings.shape
    out_dtype = embeddings.dtype
    emb_bytes = jnp.dtype(embeddings.dtype).itemsize

    # MXU dtype: bf16 is the native MXU dtype on all generations; accumulation,
    # softmax and the weighted sum stay f32. An exact f32-MXU path is retained.
    mxu_dtype = jnp.bfloat16 if use_bf16_mxu else jnp.float32
    if approx_recip is None:
        approx_recip = use_bf16_mxu
    w_bytes = jnp.dtype(mxu_dtype).itemsize

    # Generation-aware VMEM budget. v5e/v6e: 128 MiB physical; v7x: 64 MiB and
    # 2 TensorCores per chip (want >= 2 grid steps on the parallel axis).
    try:
        vmem_capacity = int(pltpu.get_tpu_info().vmem_capacity_bytes)
    except Exception:
        vmem_capacity = 64 * 1024 * 1024  # conservative (v7x-style) fallback
    if vmem_capacity >= 100 * 1024 * 1024:          # v5e / v6e
        vmem_limit = 96 * 1024 * 1024
        tb_max = 512
        force_two_steps = False
    else:                                           # v7x-class
        vmem_limit = 48 * 1024 * 1024
        tb_max = 256
        force_two_steps = True

    # Sublane tile of the output dtype (bf16 packs 2 rows per sublane).
    sub = {1: 32, 2: 16, 4: 8}.get(emb_bytes, 8)

    # Lane-dense D, sublane-aligned batch tile.
    d_pad = _round_up(d, 128)
    b_min = _round_up(b, sub)
    tb = _round_up(min(tb_max, b_min), sub)

    def footprint(tb_):
        return (2 * n * tb_ * d_pad * emb_bytes      # emb block, double-buffered
                + 2 * tb_ * d_pad * emb_bytes        # out block, double-buffered
                + 2 * d_pad * d_pad * w_bytes        # W1 + W2, single-buffered
                + 2 * 2 * d_pad * 4                  # biases
                + 2 * n * tb_ * d_pad * 4            # h + logits (f32)
                + 4 * tb_ * d_pad * 4)               # exp slice + accumulators

    while tb > sub and footprint(tb) > int(0.8 * vmem_limit):
        tb = max(sub, _round_up(tb // 2, sub))
    b_pad = _round_up(b_min, tb)

    # Two TensorCores on v7x: give the parallel batch axis at least 2 steps.
    if force_two_steps:
        while b_pad // tb < 2 and tb >= 2 * sub:
            tb = _round_up(tb // 2, sub)
            b_pad = _round_up(b_min, tb)

    grid = (b_pad // tb,)

    # Zero padding is safe: padded D lanes have zero weights/biases -> equal
    # logits across N -> uniform attention applied to zero embeddings -> zero
    # output; padded batch rows are sliced off below. Padding copies are only
    # issued when actually needed (aligned inputs pass straight through).
    if b_pad != b or d_pad != d:
        emb_p = jnp.zeros((n, b_pad, d_pad), embeddings.dtype).at[:, :b, :d].set(embeddings)
    else:
        emb_p = embeddings

    def pad_w(w):
        w = jnp.asarray(w, mxu_dtype)
        if d_pad != d:
            w = jnp.zeros((d_pad, d_pad), mxu_dtype).at[:d, :d].set(w)
        return w

    def pad_b(bias):
        bias = jnp.asarray(bias, jnp.float32)
        if d_pad != d:
            bias = jnp.zeros((d_pad,), jnp.float32).at[:d].set(bias)
        return bias.reshape(1, d_pad)

    w1_p, w2_p = pad_w(w1), pad_w(w2)
    b1_p, b2_p = pad_b(b1), pad_b(b2)

    cost = pl.CostEstimate(
        flops=int(4 * n * b_pad * d_pad * d_pad),               # two GEMMs
        transcendentals=int(n * b_pad * d_pad),                 # exp
        bytes_accessed=int(n * b_pad * d_pad * emb_bytes
                           + 2 * d_pad * d_pad * w_bytes
                           + b_pad * d_pad * emb_bytes),
    )

    kernel = functools.partial(_center_intersection_kernel,
                               mxu_dtype=mxu_dtype, approx_recip=approx_recip)

    resident = pl.Buffered(1)   # grid-invariant params: one VMEM buffer, no double-buffering

    out_p = pl.pallas_call(
        kernel,
        out_shape=jax.ShapeDtypeStruct((b_pad, d_pad), out_dtype),
        grid=grid,
        in_specs=[
            pl.BlockSpec((n, tb, d_pad), lambda i: (0, i, 0)),                       # emb: tiled over B
            pl.BlockSpec((d_pad, d_pad), lambda i: (0, 0), pipeline_mode=resident),  # W1
            pl.BlockSpec((1, d_pad), lambda i: (0, 0), pipeline_mode=resident),      # b1
            pl.BlockSpec((d_pad, d_pad), lambda i: (0, 0), pipeline_mode=resident),  # W2
            pl.BlockSpec((1, d_pad), lambda i: (0, 0), pipeline_mode=resident),      # b2
        ],
        out_specs=pl.BlockSpec((tb, d_pad), lambda i: (i, 0)),
        compiler_params=pltpu.CompilerParams(
            dimension_semantics=("parallel",),
            vmem_limit_bytes=vmem_limit,
        ),
        cost_estimate=cost,
    )(emb_p, w1_p, b1_p, w2_p, b2_p)

    return out_p[:b, :d]


def _reference(embeddings, w1, b1, w2, b2):
    emb = jnp.asarray(embeddings, jnp.float32)
    h = jax.nn.relu(emb @ w1.T + b1)
    att = jax.nn.softmax(h @ w2.T + b2, axis=0)
    return jnp.sum(att * emb, axis=0)


if __name__ == "__main__":
    key = jax.random.PRNGKey(0)
    N, B, D = 4, 8, 32   # num intersected sets, batch, embedding dim

    k_emb, k_w1, k_b1, k_w2, k_b2 = jax.random.split(key, 5)

    embeddings = jax.random.normal(k_emb, (N, B, D), dtype=jnp.float32)

    # Deterministic parameter init (Xavier-uniform weights, PyTorch-style biases).
    xavier_bound = float(np.sqrt(6.0 / (D + D)))
    w1 = jax.random.uniform(k_w1, (D, D), jnp.float32, -xavier_bound, xavier_bound)
    w2 = jax.random.uniform(k_w2, (D, D), jnp.float32, -xavier_bound, xavier_bound)
    bias_bound = float(1.0 / np.sqrt(D))
    b1 = jax.random.uniform(k_b1, (D,), jnp.float32, -bias_bound, bias_bound)
    b2 = jax.random.uniform(k_b2, (D,), jnp.float32, -bias_bound, bias_bound)

    ref = _reference(embeddings, w1, b1, w2, b2)

    # Exact path (f32 MXU, exact divide): tight tolerance vs. the f32 reference.
    out_f32 = center_intersection(embeddings, w1, b1, w2, b2, use_bf16_mxu=False)
    out_f32 = jax.block_until_ready(out_f32)
    np.testing.assert_allclose(np.asarray(out_f32), np.asarray(ref), rtol=1e-5, atol=1e-5)

    # Fast path (bf16 MXU inputs + approx reciprocal): looser tolerance.
    out_bf16 = center_intersection(embeddings, w1, b1, w2, b2)
    out_bf16 = jax.block_until_ready(out_bf16)
    np.testing.assert_allclose(np.asarray(out_bf16), np.asarray(ref), rtol=5e-2, atol=5e-2)

    print("KERNEL_OK")
</pallas_src>

<mosaic_0001>
module attributes {stable_mosaic.version = 11 : i64} {
  func.func @_center_intersection_kernel(%arg0: i32, %arg1: memref<4x8x128xf32, #tpu.memory_space<vmem>>, %arg2: memref<128x128xf32, #tpu.memory_space<vmem>>, %arg3: memref<1x128xf32, #tpu.memory_space<vmem>>, %arg4: memref<128x128xf32, #tpu.memory_space<vmem>>, %arg5: memref<1x128xf32, #tpu.memory_space<vmem>>, %arg6: memref<8x128xf32, #tpu.memory_space<vmem>>) attributes {dimension_semantics = [#tpu.dimension_semantics<parallel>], iteration_bounds = array<i64: 1>, scalar_prefetch = 0 : i64, scratch_operands = 0 : i64, tpu.core_type = #tpu.core_type<tc>, window_params = [{transform_indices = @transform_0, window_bounds = array<i64: 4, 8, 128>}, {pipeline_mode = #tpu.pipeline_mode<synchronous>, transform_indices = @transform_1, window_bounds = array<i64: 128, 128>}, {pipeline_mode = #tpu.pipeline_mode<synchronous>, transform_indices = @transform_2, window_bounds = array<i64: 1, 128>}, {pipeline_mode = #tpu.pipeline_mode<synchronous>, transform_indices = @transform_3, window_bounds = array<i64: 128, 128>}, {pipeline_mode = #tpu.pipeline_mode<synchronous>, transform_indices = @transform_4, window_bounds = array<i64: 1, 128>}, {transform_indices = @transform_5, window_bounds = array<i64: 8, 128>}]} {
    %c0 = arith.constant 0 : index
    %c0_0 = arith.constant 0 : index
    %c0_1 = arith.constant 0 : index
    %0 = vector.load %arg1[%c0, %c0_0, %c0_1] : memref<4x8x128xf32, #tpu.memory_space<vmem>>, vector<4x8x128xf32>
    %1 = vector.shape_cast %0 : vector<4x8x128xf32> to vector<32x128xf32>
    %c0_2 = arith.constant 0 : index
    %c0_3 = arith.constant 0 : index
    %2 = vector.load %arg2[%c0_2, %c0_3] : memref<128x128xf32, #tpu.memory_space<vmem>>, vector<128x128xf32>
    %cst = arith.constant dense<0.000000e+00> : vector<32x128xf32>
    %3 = tpu.matmul %1, %2, %cst {dimension_numbers = #tpu.dot_dimension_numbers<[1], [1], [0], [0], [0, 0, 1, 0], [], []>} : vector<32x128xf32>, vector<128x128xf32>, vector<32x128xf32> -> vector<32x128xf32>
    %c0_4 = arith.constant 0 : index
    %c0_5 = arith.constant 0 : index
    %4 = vector.load %arg3[%c0_4, %c0_5] : memref<1x128xf32, #tpu.memory_space<vmem>>, vector<1x128xf32>
    %5 = vector.broadcast %4 : vector<1x128xf32> to vector<32x128xf32>
    %6 = arith.addf %3, %5 : vector<32x128xf32>
    %cst_6 = arith.constant 0.000000e+00 : f32
    %7 = vector.broadcast %cst_6 : f32 to vector<32x128xf32>
    %8 = arith.maximumf %6, %7 : vector<32x128xf32>
    %c0_7 = arith.constant 0 : index
    %c0_8 = arith.constant 0 : index
    %9 = vector.load %arg4[%c0_7, %c0_8] : memref<128x128xf32, #tpu.memory_space<vmem>>, vector<128x128xf32>
    %cst_9 = arith.constant dense<0.000000e+00> : vector<32x128xf32>
    %10 = tpu.matmul %8, %9, %cst_9 {dimension_numbers = #tpu.dot_dimension_numbers<[1], [1], [0], [0], [0, 0, 1, 0], [], []>} : vector<32x128xf32>, vector<128x128xf32>, vector<32x128xf32> -> vector<32x128xf32>
    %c0_10 = arith.constant 0 : index
    %c0_11 = arith.constant 0 : index
    %11 = vector.load %arg5[%c0_10, %c0_11] : memref<1x128xf32, #tpu.memory_space<vmem>>, vector<1x128xf32>
    %12 = vector.broadcast %11 : vector<1x128xf32> to vector<32x128xf32>
    %13 = arith.addf %10, %12 : vector<32x128xf32>
    %14 = vector.shape_cast %13 : vector<32x128xf32> to vector<4x8x128xf32>
    %cst_12 = arith.constant dense<0xFF800000> : vector<8x128xf32>
    %15 = vector.multi_reduction <maximumf>, %14, %cst_12 [0] : vector<4x8x128xf32> to vector<8x128xf32>
    %cst_13 = arith.constant 0.000000e+00 : f32
    %16 = vector.broadcast %cst_13 : f32 to vector<8x128xf32>
    %cst_14 = arith.constant 0.000000e+00 : f32
    %17 = vector.broadcast %cst_14 : f32 to vector<8x128xf32>
    %18 = vector.extract_strided_slice %14 {offsets = [0, 0, 0], sizes = [1, 8, 128], strides = [1, 1, 1]} : vector<4x8x128xf32> to vector<1x8x128xf32>
    %19 = vector.shape_cast %18 : vector<1x8x128xf32> to vector<8x128xf32>
    %20 = arith.subf %19, %15 : vector<8x128xf32>
    %21 = math.exp %20 : vector<8x128xf32>
    %22 = arith.addf %16, %21 : vector<8x128xf32>
    %23 = vector.extract_strided_slice %0 {offsets = [0, 0, 0], sizes = [1, 8, 128], strides = [1, 1, 1]} : vector<4x8x128xf32> to vector<1x8x128xf32>
    %24 = vector.shape_cast %23 : vector<1x8x128xf32> to vector<8x128xf32>
    %25 = arith.mulf %21, %24 : vector<8x128xf32>
    %26 = arith.addf %17, %25 : vector<8x128xf32>
    %27 = vector.extract_strided_slice %14 {offsets = [1, 0, 0], sizes = [1, 8, 128], strides = [1, 1, 1]} : vector<4x8x128xf32> to vector<1x8x128xf32>
    %28 = vector.shape_cast %27 : vector<1x8x128xf32> to vector<8x128xf32>
    %29 = arith.subf %28, %15 : vector<8x128xf32>
    %30 = math.exp %29 : vector<8x128xf32>
    %31 = arith.addf %22, %30 : vector<8x128xf32>
    %32 = vector.extract_strided_slice %0 {offsets = [1, 0, 0], sizes = [1, 8, 128], strides = [1, 1, 1]} : vector<4x8x128xf32> to vector<1x8x128xf32>
    %33 = vector.shape_cast %32 : vector<1x8x128xf32> to vector<8x128xf32>
    %34 = arith.mulf %30, %33 : vector<8x128xf32>
    %35 = arith.addf %26, %34 : vector<8x128xf32>
    %36 = vector.extract_strided_slice %14 {offsets = [2, 0, 0], sizes = [1, 8, 128], strides = [1, 1, 1]} : vector<4x8x128xf32> to vector<1x8x128xf32>
    %37 = vector.shape_cast %36 : vector<1x8x128xf32> to vector<8x128xf32>
    %38 = arith.subf %37, %15 : vector<8x128xf32>
    %39 = math.exp %38 : vector<8x128xf32>
    %40 = arith.addf %31, %39 : vector<8x128xf32>
    %41 = vector.extract_strided_slice %0 {offsets = [2, 0, 0], sizes = [1, 8, 128], strides = [1, 1, 1]} : vector<4x8x128xf32> to vector<1x8x128xf32>
    %42 = vector.shape_cast %41 : vector<1x8x128xf32> to vector<8x128xf32>
    %43 = arith.mulf %39, %42 : vector<8x128xf32>
    %44 = arith.addf %35, %43 : vector<8x128xf32>
    %45 = vector.extract_strided_slice %14 {offsets = [3, 0, 0], sizes = [1, 8, 128], strides = [1, 1, 1]} : vector<4x8x128xf32> to vector<1x8x128xf32>
    %46 = vector.shape_cast %45 : vector<1x8x128xf32> to vector<8x128xf32>
    %47 = arith.subf %46, %15 : vector<8x128xf32>
    %48 = math.exp %47 : vector<8x128xf32>
    %49 = arith.addf %40, %48 : vector<8x128xf32>
    %50 = vector.extract_strided_slice %0 {offsets = [3, 0, 0], sizes = [1, 8, 128], strides = [1, 1, 1]} : vector<4x8x128xf32> to vector<1x8x128xf32>
    %51 = vector.shape_cast %50 : vector<1x8x128xf32> to vector<8x128xf32>
    %52 = arith.mulf %48, %51 : vector<8x128xf32>
    %53 = arith.addf %44, %52 : vector<8x128xf32>
    %54 = arith.divf %53, %49 : vector<8x128xf32>
    %c0_15 = arith.constant 0 : index
    %c0_16 = arith.constant 0 : index
    %55 = vector.load %arg6[%c0_15, %c0_16] : memref<8x128xf32, #tpu.memory_space<vmem>>, vector<8x128xf32>
    tpu.vector_store %arg6[%c0_15, %c0_16], %54 {strides = array<i32>} : memref<8x128xf32, #tpu.memory_space<vmem>>, vector<8x128xf32>,
    return
  }
  func.func @transform_0(%arg0: i32) -> (i32, i32, i32) {
    %c0_i32 = arith.constant 0 : i32
    %c0_i32_0 = arith.constant 0 : i32
    %c0_i32_1 = arith.constant 0 : i32
    return %c0_i32, %arg0, %c0_i32_0 : i32, i32, i32
  }
  func.func @transform_1(%arg0: i32) -> (i32, i32) {
    %c0_i32 = arith.constant 0 : i32
    %c0_i32_0 = arith.constant 0 : i32
    %c0_i32_1 = arith.constant 0 : i32
    return %c0_i32, %c0_i32_0 : i32, i32
  }
  func.func @transform_2(%arg0: i32) -> (i32, i32) {
    %c0_i32 = arith.constant 0 : i32
    %c0_i32_0 = arith.constant 0 : i32
    %c0_i32_1 = arith.constant 0 : i32
    return %c0_i32, %c0_i32_0 : i32, i32
  }
  func.func @transform_3(%arg0: i32) -> (i32, i32) {
    %c0_i32 = arith.constant 0 : i32
    %c0_i32_0 = arith.constant 0 : i32
    %c0_i32_1 = arith.constant 0 : i32
    return %c0_i32, %c0_i32_0 : i32, i32
  }
  func.func @transform_4(%arg0: i32) -> (i32, i32) {
    %c0_i32 = arith.constant 0 : i32
    %c0_i32_0 = arith.constant 0 : i32
    %c0_i32_1 = arith.constant 0 : i32
    return %c0_i32, %c0_i32_0 : i32, i32
  }
  func.func @transform_5(%arg0: i32) -> (i32, i32) {
    %c0_i32 = arith.constant 0 : i32
    %c0_i32_0 = arith.constant 0 : i32
    return %arg0, %c0_i32 : i32, i32
  }
}

</mosaic_0001>

<llo_original>
// kernel: tpu_custom_call.1
$region0: #{tpu_custom_call.1}
  #allocation0 [shape = 'u32[]', space=smem, size = 0x4, offset = 0x4, fixed_abs, tag = 'smem constant byte address 0x4 - core index']
  #allocation1 [shape = 'u32[144,128]{1,0:T(1,128)}', space=vmem, size = 0x12000, scoped, tag = 'internal scratch']
  %s0 = inlined_call_operand.hbm [shape: f32[4,8,128], index: 0, kind: input, shape index: {}]
  %s1 = inlined_call_operand.hbm [shape: f32[128,128], index: 1, kind: input, shape index: {}]
  %s2 = inlined_call_operand.vmem [shape: f32[1,128], index: 2, kind: input, shape index: {}]
  %s3 = inlined_call_operand.hbm [shape: f32[128,128], index: 3, kind: input, shape index: {}]
  %s4 = inlined_call_operand.vmem [shape: f32[1,128], index: 4, kind: input, shape index: {}]
  %s5 = inlined_call_operand.hbm [shape: f32[8,128], index: 5, kind: output, shape index: {}]
  %s6 = sld [smem:[#allocation0]]
  $region42: #{tpu_custom_call.1} parent=0
    _
  %s8 = ssub.s32 1, %s6
  %s9 = scalar_select 0, %s8, %s6
  $region1: #{tpu_custom_call.1} parent=0
    #allocation2 [shape = 'u8[16384]{0}', space=vmem, size = 0x4000, scoped, tag = 'input window, operand 0, single buffered']
    #allocation3 [shape = 's32[1]{0}', space=sflag, size = 0x4, scoped, tag = 'scoped memory for tpu_custom_call.1']
    #allocation4 [shape = 's32[1]{0}', space=sflag, size = 0x4, scoped, tag = 'scoped memory for tpu_custom_call.1']
    #allocation5 [shape = 'u8[65536]{0}', space=vmem, size = 0x10000, scoped, tag = 'input window, operand 1, single buffered']
    #allocation6 [shape = 's32[1]{0}', space=sflag, size = 0x4, scoped, tag = 'scoped memory for tpu_custom_call.1']
    #allocation7 [shape = 'u8[65536]{0}', space=vmem, size = 0x10000, scoped, tag = 'input window, operand 3, single buffered']
    #allocation8 [shape = 'u8[4096]{0}', space=vmem, size = 0x1000, scoped, tag = 'output window, operand 0, single buffered']
    %10 = vsyncpa [#allocation3], 0
    %11 = vsyncpa [#allocation6], 0
    %12 = vsyncpa [#allocation4], 0
    // Predicated region
    $region2: #{tpu_custom_call.1} parent=1 // pred_check
      _
    $region3: #{tpu_custom_call.1} parent=1 // pred_check_branch
      %14 = sbr.rel (0) target = $region5
    $region4: #{tpu_custom_call.1} parent=1 // pred_region
      %s16 = ssub.s32 512, 512
      %17 = vsyncadd [#allocation3], %s16
      %s18 = sshll.u32 [#allocation2], 4
      %s19 = int_to_ptr.vmem [resolvable:$true] %s18
      %24 = dma.hbm_to_vmem [thread:$0]  %s0, 512, %s19, [#allocation3], 128, 128, 8
    $region5: #{tpu_custom_call.1} parent=1 // pred_fallthru
      _
    // Predicated region
    $region6: #{tpu_custom_call.1} parent=1 // pred_check
      _
    $region7: #{tpu_custom_call.1} parent=1 // pred_check_branch
      %26 = sbr.rel (0) target = $region9
    $region8: #{tpu_custom_call.1} parent=1 // pred_region
      %s28 = ssub.s32 2048, 2048
      %29 = vsyncadd [#allocation6], %s28
      %s30 = sshll.u32 [#allocation5], 4
      %s31 = int_to_ptr.vmem [resolvable:$true] %s30
      %36 = dma.hbm_to_vmem [thread:$0]  %s1, 2048, %s31, [#allocation6], 128, 128, 8
    $region9: #{tpu_custom_call.1} parent=1 // pred_fallthru
      _
    // Predicated region
    $region10: #{tpu_custom_call.1} parent=1 // pred_check
      _
    $region11: #{tpu_custom_call.1} parent=1 // pred_check_branch
      %38 = sbr.rel (0) target = $region13
    $region12: #{tpu_custom_call.1} parent=1 // pred_region
      _
    $region13: #{tpu_custom_call.1} parent=1 // pred_fallthru
      _
    // Predicated region
    $region14: #{tpu_custom_call.1} parent=1 // pred_check
      _
    $region15: #{tpu_custom_call.1} parent=1 // pred_check_branch
      %40 = sbr.rel (0) target = $region17
    $region16: #{tpu_custom_call.1} parent=1 // pred_region
      %s42 = ssub.s32 2048, 2048
      %43 = vsyncadd [#allocation6], %s42
      %s44 = sshll.u32 [#allocation7], 4
      %s45 = int_to_ptr.vmem [resolvable:$true] %s44
      %50 = dma.hbm_to_vmem [thread:$0]  %s3, 2048, %s45, [#allocation6], 128, 128, 8
    $region17: #{tpu_custom_call.1} parent=1 // pred_fallthru
      _
    // Predicated region
    $region18: #{tpu_custom_call.1} parent=1 // pred_check
      _
    $region19: #{tpu_custom_call.1} parent=1 // pred_check_branch
      %52 = sbr.rel (0) target = $region21
    $region20: #{tpu_custom_call.1} parent=1 // pred_region
      _
    $region21: #{tpu_custom_call.1} parent=1 // pred_fallthru
      _
    // Predicated region
    $region22: #{tpu_custom_call.1} parent=1 // pred_check
      _
    $region23: #{tpu_custom_call.1} parent=1 // pred_check_branch
      %54 = sbr.rel (0) target = $region25
    $region24: #{tpu_custom_call.1} parent=1 // pred_region
      %55 = dma.done [#allocation3], 512
    $region25: #{tpu_custom_call.1} parent=1 // pred_fallthru
      _
    // Predicated region
    $region26: #{tpu_custom_call.1} parent=1 // pred_check
      _
    $region27: #{tpu_custom_call.1} parent=1 // pred_check_branch
      %57 = sbr.rel (0) target = $region29
    $region28: #{tpu_custom_call.1} parent=1 // pred_region
      %58 = dma.done [#allocation6], 2048
    $region29: #{tpu_custom_call.1} parent=1 // pred_fallthru
      _
    // Predicated region
    $region30: #{tpu_custom_call.1} parent=1 // pred_check
      _
    $region31: #{tpu_custom_call.1} parent=1 // pred_check_branch
      %60 = sbr.rel (0) target = $region33
    $region32: #{tpu_custom_call.1} parent=1 // pred_region
      %61 = dma.done [#allocation6], 2048
    $region33: #{tpu_custom_call.1} parent=1 // pred_fallthru
      _
    %v62 = vld [vmem:[#allocation2] sm:$0xff]
    %v63 = vld [vmem:[#allocation2 + $0x8] sm:$0xff]
    %v64 = vld [vmem:[#allocation2 + $0x10] sm:$0xff]
    %v65 = vld [vmem:[#allocation2 + $0x18] sm:$0xff]
    %v66 = vld [vmem:[#allocation5] sm:$0xff]
    %v67 = vld [vmem:[#allocation5 + $0x8] sm:$0xff]
    %v68 = vld [vmem:[#allocation5 + $0x10] sm:$0xff]
    %v69 = vld [vmem:[#allocation5 + $0x18] sm:$0xff]
    %v70 = vld [vmem:[#allocation5 + $0x20] sm:$0xff]
    %v71 = vld [vmem:[#allocation5 + $0x28] sm:$0xff]
    %v72 = vld [vmem:[#allocation5 + $0x30] sm:$0xff]
    %v73 = vld [vmem:[#allocation5 + $0x38] sm:$0xff]
    %v74 = vld [vmem:[#allocation5 + $0x40] sm:$0xff]
    %v75 = vld [vmem:[#allocation5 + $0x48] sm:$0xff]
    %v76 = vld [vmem:[#allocation5 + $0x50] sm:$0xff]
    %v77 = vld [vmem:[#allocation5 + $0x58] sm:$0xff]
    %v78 = vld [vmem:[#allocation5 + $0x60] sm:$0xff]
    %v79 = vld [vmem:[#allocation5 + $0x68] sm:$0xff]
    %v80 = vld [vmem:[#allocation5 + $0x70] sm:$0xff]
    %v81 = vld [vmem:[#allocation5 + $0x78] sm:$0xff]
    %v82 = vld [vmem:[%s2] sm:$0x1]
    %v84 = vlaneseq
    %v85 = vshrl.u32 %v84, 7
    %v86 = vsub.s32 0, %v85
    %v87 = vrot.slane %v82, %v86
    %89 = vmatprep.subr.mxu0 0.0
    %90 = vmatpush1.xpose.msra.mxu0 %v66
    %91 = vmatprep.subr.mxu0 0.0
    %92 = vmatpush1.xpose.msra.mxu0 %v67
    %93 = vmatprep.subr.mxu0 0.0
    %94 = vmatpush1.xpose.msra.mxu0 %v68
    %95 = vmatprep.subr.mxu0 0.0
    %96 = vmatpush1.xpose.msra.mxu0 %v69
    %97 = vmatprep.subr.mxu0 0.0
    %98 = vmatpush1.xpose.msra.mxu0 %v70
    %99 = vmatprep.subr.mxu0 0.0
    %100 = vmatpush1.xpose.msra.mxu0 %v71
    %101 = vmatprep.subr.mxu0 0.0
    %102 = vmatpush1.xpose.msra.mxu0 %v72
    %103 = vmatprep.subr.mxu0 0.0
    %104 = vmatpush1.xpose.msra.mxu0 %v73
    %105 = vmatprep.subr.mxu0 0.0
    %106 = vmatpush1.xpose.msra.mxu0 %v74
    %107 = vmatprep.subr.mxu0 0.0
    %108 = vmatpush1.xpose.msra.mxu0 %v75
    %109 = vmatprep.subr.mxu0 0.0
    %110 = vmatpush1.xpose.msra.mxu0 %v76
    %111 = vmatprep.subr.mxu0 0.0
    %112 = vmatpush1.xpose.msra.mxu0 %v77
    %113 = vmatprep.subr.mxu0 0.0
    %114 = vmatpush1.xpose.msra.mxu0 %v78
    %115 = vmatprep.subr.mxu0 0.0
    %116 = vmatpush1.xpose.msra.mxu0 %v79
    %117 = vmatprep.subr.mxu0 0.0
    %118 = vmatpush1.xpose.msra.mxu0 %v80
    %119 = vmatprep.subr.mxu0 0.0
    %120 = vmatpush1.xpose.msra.mxu0 %v81
    %121 = vmatprep.subr.mxu0 0.0
    %122 = vmatpush1.xpose.msra.mxu0 0.0
    %123 = vmatprep.subr.mxu0 0.0
    %124 = vmatpush1.xpose.msra.mxu0 0.0
    %125 = vmatprep.subr.mxu0 0.0
    %126 = vmatpush1.xpose.msra.mxu0 0.0
    %127 = vmatprep.subr.mxu0 0.0
    %128 = vmatpush1.xpose.msra.mxu0 0.0
    %129 = vmatprep.subr.mxu0 0.0
    %130 = vmatpush1.xpose.msra.mxu0 0.0
    %131 = vmatprep.subr.mxu0 0.0
    %132 = vmatpush1.xpose.msra.mxu0 0.0
    %133 = vmatprep.subr.mxu0 0.0
    %134 = vmatpush1.xpose.msra.mxu0 0.0
    %135 = vmatprep.subr.mxu0 0.0
    %136 = vmatpush1.xpose.msra.mxu0 0.0
    %137 = vmatprep.subr.mxu0 0.0
    %138 = vmatpush1.xpose.msra.mxu0 0.0
    %139 = vmatprep.subr.mxu0 0.0
    %140 = vmatpush1.xpose.msra.mxu0 0.0
    %141 = vmatprep.subr.mxu0 0.0
    %142 = vmatpush1.xpose.msra.mxu0 0.0
    %143 = vmatprep.subr.mxu0 0.0
    %144 = vmatpush1.xpose.msra.mxu0 0.0
    %145 = vmatprep.subr.mxu0 0.0
    %146 = vmatpush1.xpose.msra.mxu0 0.0
    %147 = vmatprep.subr.mxu0 0.0
    %148 = vmatpush1.xpose.msra.mxu0 0.0
    %149 = vmatprep.subr.mxu0 0.0
    %150 = vmatpush1.xpose.msra.mxu0 0.0
    %151 = vmatprep.subr.mxu0 0.0
    %152 = vmatpush1.xpose.msra.mxu0 0.0
    %153 = vmatprep.mubr.f32.mxu0 0.0
    %154 = vmatmul.mubr.f32.gmra.mrb[0].mxu0 %v62
    %v155 = vpop.f32.mrb[0].mxu0
    %v156 = vadd.f32 %v87, %v155
    %v157 = vpop.f32.mrb[0].mxu0
    %158 = vmatprep.mubr.f32.mxu0 0.0
    %159 = vmatmul.mubr.f32.gmra.mrb[0].mxu0 %v63
    %v160 = vpop.f32.mrb[0].mxu0
    %v161 = vadd.f32 %v87, %v160
    %v162 = vpop.f32.mrb[0].mxu0
    %163 = vmatprep.mubr.f32.mxu0 0.0
    %164 = vmatmul.mubr.f32.gmra.mrb[0].mxu0 %v64
    %v165 = vpop.f32.mrb[0].mxu0
    %v166 = vadd.f32 %v87, %v165
    %v167 = vpop.f32.mrb[0].mxu0
    %168 = vmatprep.mubr.f32.mxu0 0.0
    %169 = vmatmul.mubr.f32.gmra.mrb[0].mxu0 %v65
    %v170 = vpop.f32.mrb[0].mxu0
    %v171 = vadd.f32 %v87, %v170
    %v172 = vpop.f32.mrb[0].mxu0
    %173 = vdwg.mxu0
    %v174 = vmax.f32 %v156, 0.0
    %v175 = vmax.f32 %v161, 0.0
    %v176 = vmax.f32 %v166, 0.0
    %v177 = vmax.f32 %v171, 0.0
    %v178 = vld [vmem:[#allocation7] sm:$0xff]
    %v179 = vld [vmem:[#allocation7 + $0x8] sm:$0xff]
    %v180 = vld [vmem:[#allocation7 + $0x10] sm:$0xff]
    %v181 = vld [vmem:[#allocation7 + $0x18] sm:$0xff]
    %v182 = vld [vmem:[#allocation7 + $0x20] sm:$0xff]
    %v183 = vld [vmem:[#allocation7 + $0x28] sm:$0xff]
    %v184 = vld [vmem:[#allocation7 + $0x30] sm:$0xff]
    %v185 = vld [vmem:[#allocation7 + $0x38] sm:$0xff]
    %v186 = vld [vmem:[#allocation7 + $0x40] sm:$0xff]
    %v187 = vld [vmem:[#allocation7 + $0x48] sm:$0xff]
    %v188 = vld [vmem:[#allocation7 + $0x50] sm:$0xff]
    %v189 = vld [vmem:[#allocation7 + $0x58] sm:$0xff]
    %v190 = vld [vmem:[#allocation7 + $0x60] sm:$0xff]
    %v191 = vld [vmem:[#allocation7 + $0x68] sm:$0xff]
    %v192 = vld [vmem:[#allocation7 + $0x70] sm:$0xff]
    %v193 = vld [vmem:[#allocation7 + $0x78] sm:$0xff]
    %v194 = vld [vmem:[%s4] sm:$0x1]
    %v196 = vlaneseq
    %v197 = vshrl.u32 %v196, 7
    %v198 = vsub.s32 0, %v197
    %v199 = vrot.slane %v194, %v198
    %201 = vmatprep.subr.mxu0 0.0
    %202 = vmatpush1.xpose.msra.mxu0 %v178
    %203 = vmatprep.subr.mxu0 0.0
    %204 = vmatpush1.xpose.msra.mxu0 %v179
    %205 = vmatprep.subr.mxu0 0.0
    %206 = vmatpush1.xpose.msra.mxu0 %v180
    %207 = vmatprep.subr.mxu0 0.0
    %208 = vmatpush1.xpose.msra.mxu0 %v181
    %209 = vmatprep.subr.mxu0 0.0
    %210 = vmatpush1.xpose.msra.mxu0 %v182
    %211 = vmatprep.subr.mxu0 0.0
    %212 = vmatpush1.xpose.msra.mxu0 %v183
    %213 = vmatprep.subr.mxu0 0.0
    %214 = vmatpush1.xpose.msra.mxu0 %v184
    %215 = vmatprep.subr.mxu0 0.0
    %216 = vmatpush1.xpose.msra.mxu0 %v185
    %217 = vmatprep.subr.mxu0 0.0
    %218 = vmatpush1.xpose.msra.mxu0 %v186
    %219 = vmatprep.subr.mxu0 0.0
    %220 = vmatpush1.xpose.msra.mxu0 %v187
    %221 = vmatprep.subr.mxu0 0.0
    %222 = vmatpush1.xpose.msra.mxu0 %v188
    %223 = vmatprep.subr.mxu0 0.0
    %224 = vmatpush1.xpose.msra.mxu0 %v189
    %225 = vmatprep.subr.mxu0 0.0
    %226 = vmatpush1.xpose.msra.mxu0 %v190
    %227 = vmatprep.subr.mxu0 0.0
    %228 = vmatpush1.xpose.msra.mxu0 %v191
    %229 = vmatprep.subr.mxu0 0.0
    %230 = vmatpush1.xpose.msra.mxu0 %v192
    %231 = vmatprep.subr.mxu0 0.0
    %232 = vmatpush1.xpose.msra.mxu0 %v193
    %233 = vmatprep.subr.mxu0 0.0
    %234 = vmatpush1.xpose.msra.mxu0 0.0
    %235 = vmatprep.subr.mxu0 0.0
    %236 = vmatpush1.xpose.msra.mxu0 0.0
    %237 = vmatprep.subr.mxu0 0.0
    %238 = vmatpush1.xpose.msra.mxu0 0.0
    %239 = vmatprep.subr.mxu0 0.0
    %240 = vmatpush1.xpose.msra.mxu0 0.0
    %241 = vmatprep.subr.mxu0 0.0
    %242 = vmatpush1.xpose.msra.mxu0 0.0
    %243 = vmatprep.subr.mxu0 0.0
    %244 = vmatpush1.xpose.msra.mxu0 0.0
    %245 = vmatprep.subr.mxu0 0.0
    %246 = vmatpush1.xpose.msra.mxu0 0.0
    %247 = vmatprep.subr.mxu0 0.0
    %248 = vmatpush1.xpose.msra.mxu0 0.0
    %249 = vmatprep.subr.mxu0 0.0
    %250 = vmatpush1.xpose.msra.mxu0 0.0
    %251 = vmatprep.subr.mxu0 0.0
    %252 = vmatpush1.xpose.msra.mxu0 0.0
    %253 = vmatprep.subr.mxu0 0.0
    %254 = vmatpush1.xpose.msra.mxu0 0.0
    %255 = vmatprep.subr.mxu0 0.0
    %256 = vmatpush1.xpose.msra.mxu0 0.0
    %257 = vmatprep.subr.mxu0 0.0
    %258 = vmatpush1.xpose.msra.mxu0 0.0
    %259 = vmatprep.subr.mxu0 0.0
    %260 = vmatpush1.xpose.msra.mxu0 0.0
    %261 = vmatprep.subr.mxu0 0.0
    %262 = vmatpush1.xpose.msra.mxu0 0.0
    %263 = vmatprep.subr.mxu0 0.0
    %264 = vmatpush1.xpose.msra.mxu0 0.0
    %265 = vmatprep.mubr.f32.mxu0 0.0
    %266 = vmatmul.mubr.f32.gmra.mrb[0].mxu0 %v174
    %v267 = vpop.f32.mrb[0].mxu0
    %v268 = vadd.f32 %v199, %v267
    %v269 = vpop.f32.mrb[0].mxu0
    %270 = vmatprep.mubr.f32.mxu0 0.0
    %271 = vmatmul.mubr.f32.gmra.mrb[0].mxu0 %v175
    %v272 = vpop.f32.mrb[0].mxu0
    %v273 = vadd.f32 %v199, %v272
    %v274 = vpop.f32.mrb[0].mxu0
    %275 = vmatprep.mubr.f32.mxu0 0.0
    %276 = vmatmul.mubr.f32.gmra.mrb[0].mxu0 %v176
    %v277 = vpop.f32.mrb[0].mxu0
    %v278 = vadd.f32 %v199, %v277
    %v279 = vpop.f32.mrb[0].mxu0
    %280 = vmatprep.mubr.f32.mxu0 0.0
    %281 = vmatmul.mubr.f32.gmra.mrb[0].mxu0 %v177
    %v282 = vpop.f32.mrb[0].mxu0
    %v283 = vadd.f32 %v199, %v282
    %v284 = vpop.f32.mrb[0].mxu0
    %285 = vdwg.mxu0
    %v286 = vmax.f32 %v268, %v273
    %v287 = vmax.f32 %v278, %v283
    %v288 = vmax.f32 %v286, %v287
    %v289 = vsub.f32 %v268, %v288
    %v290 = vmul.f32 %v289, 1.442695
    %v291 = vpow.pop %v290
    %v292 = vadd.f32 %v291, 0.0
    %v293 = vmul.f32 %v291, %v62
    %v294 = vadd.f32 %v293, 0.0
    %v295 = vsub.f32 %v273, %v288
    %v296 = vmul.f32 %v295, 1.442695
    %v297 = vpow.pop %v296
    %v298 = vadd.f32 %v292, %v297
    %v299 = vmul.f32 %v297, %v63
    %v300 = vadd.f32 %v294, %v299
    %v301 = vsub.f32 %v278, %v288
    %v302 = vmul.f32 %v301, 1.442695
    %v303 = vpow.pop %v302
    %v304 = vadd.f32 %v298, %v303
    %v305 = vmul.f32 %v303, %v64
    %v306 = vadd.f32 %v300, %v305
    %v307 = vsub.f32 %v283, %v288
    %v308 = vmul.f32 %v307, 1.442695
    %v309 = vpow.pop %v308
    %v310 = vadd.f32 %v304, %v309
    %v311 = vmul.f32 %v309, %v65
    %v312 = vadd.f32 %v306, %v311
    %v313 = vrcp.pop %v310
    %v314 = vmul.f32 %v312, %v313
    %315 = vst [vmem:[#allocation8] sm:$0xff] %v314
    // Predicated region
    $region34: #{tpu_custom_call.1} parent=1 // pred_check
      _
    $region35: #{tpu_custom_call.1} parent=1 // pred_check_branch
      %317 = sbr.rel (0) target = $region37
    $region36: #{tpu_custom_call.1} parent=1 // pred_region
      %s319 = ssub.s32 128, 128
      %320 = vsyncadd [#allocation4], %s319
      %s322 = sshll.u32 [#allocation8], 4
      %s323 = int_to_ptr.vmem [resolvable:$true] %s322
      %325 = dma.vmem_to_hbm [thread:$0]  %s323, 128, %s5, [#allocation4]
    $region37: #{tpu_custom_call.1} parent=1 // pred_fallthru
      _
    // Predicated region
    $region38: #{tpu_custom_call.1} parent=1 // pred_check
      _
    $region39: #{tpu_custom_call.1} parent=1 // pred_check_branch
      %327 = sbr.rel (0) target = $region41
    $region40: #{tpu_custom_call.1} parent=1 // pred_region
      %328 = dma.done [#allocation4], 128
    $region41: #{tpu_custom_call.1} parent=1 // pred_fallthru
      _
    %329 = vsyncpa [#allocation3], 1
    %330 = vsyncpa [#allocation6], 1
    %331 = vsyncpa [#allocation4], 1

</llo_original>
